<compile_context>
chip_gen: v7x
topology: tpu7x:2x2x1
jax: 0.10.0
libtpu: 0.0.40
codegen_flags: <defaults>
</compile_context>

<pallas_src>
import functools

import jax
import jax.numpy as jnp
from jax.experimental import pallas as pl
from jax.experimental.pallas import tpu as pltpu

LN_EPS = 1e-5  # PyTorch nn.LayerNorm default


def _ln(t):
    """LayerNorm over the last axis, no affine (elementwise_affine=False)."""
    mu = jnp.mean(t, axis=-1, keepdims=True)
    var = jnp.mean((t - mu) ** 2, axis=-1, keepdims=True)
    return (t - mu) * jax.lax.rsqrt(var + LN_EPS)


# ---------------------------------------------------------------------------
# per-generation tiling / VMEM configuration
# ---------------------------------------------------------------------------
def _tpu_config():
    try:
        kind = jax.devices()[0].device_kind.lower()
    except Exception:  # pragma: no cover
        kind = ""
    if "v5" in kind:
        # 128 MiB VMEM, 128x128 MXU tiles: 128-granular lane tiles, taller/skinnier.
        return dict(tq=512, tn=256, tk=256, vmem=96 * 1024 * 1024)
    if "v6" in kind:
        # 128 MiB VMEM, 256x256 MXU.
        return dict(tq=256, tn=512, tk=512, vmem=96 * 1024 * 1024)
    # v7x (and default): 64 MiB VMEM per TensorCore -> smaller tiles, leave headroom.
    # TODO(synk): fp8 weight storage (dequant in kernel) would further halve weight DMA on v7x.
    return dict(tq=256, tn=256, tk=512, vmem=48 * 1024 * 1024)


def _pick_tile(size, preferred, align):
    """Largest multiple of `align` <= `preferred` that divides `size`; else the full dim."""
    if size % align != 0:
        return size
    t = min(preferred, size)
    t -= t % align
    while t >= align:
        if size % t == 0:
            return t
        t -= align
    return size


# ---------------------------------------------------------------------------
# kernels
# ---------------------------------------------------------------------------
def _qkv_proj_kernel(x_ref, w_ref, o_ref, acc_ref):
    """qkv[b, c, qi, :] = sum_k x[b, qi, k-tile] @ wqkv[c, k-tile, :]  (K is last grid axis)."""
    k = pl.program_id(3)

    @pl.when(k == 0)
    def _():
        acc_ref[...] = jnp.zeros_like(acc_ref)

    acc_ref[...] += jnp.dot(x_ref[0], w_ref[0], preferred_element_type=jnp.float32)

    @pl.when(k == pl.num_programs(3) - 1)
    def _():
        o_ref[0, 0] = acc_ref[...].astype(o_ref.dtype)


def _attention_kernel(q_ref, k_ref, v_ref, wout_ref, bout_ref, o_ref,
                      q_scr, m_scr, l_scr, acc_scr, out_scr,
                      *, scale, heads, approx_recip):
    """Flash-style attention with per-head LayerNorm on q/k and the output projection
    folded in per head:  out[b, qi, :] = sum_h softmax(q_h k_h^T * scale) v_h @ Wout[h] + bout.
    Grid = (B, q-tiles, heads, kv-tiles); heads/kv are reduction ("arbitrary") axes."""
    h = pl.program_id(2)
    kv = pl.program_id(3)
    n_kv = pl.num_programs(3)

    # New (batch, q-tile) group: zero the projected-output accumulator.
    @pl.when(jnp.logical_and(h == 0, kv == 0))
    def _():
        out_scr[...] = jnp.zeros_like(out_scr)

    # New head: reset online-softmax state and cache LayerNorm(q) once per head.
    @pl.when(kv == 0)
    def _():
        m_scr[...] = jnp.full(m_scr.shape, -jnp.inf, dtype=m_scr.dtype)
        l_scr[...] = jnp.zeros_like(l_scr)
        acc_scr[...] = jnp.zeros_like(acc_scr)
        q_scr[...] = _ln(q_ref[0, 0].astype(jnp.float32)).astype(q_scr.dtype)

    k_t = _ln(k_ref[0, 0].astype(jnp.float32)).astype(q_scr.dtype)          # (tkv, d)
    s = jnp.dot(q_scr[...], k_t.T, preferred_element_type=jnp.float32) * scale  # (tq, tkv)

    m_new = jnp.maximum(m_scr[...], jnp.max(s, axis=-1, keepdims=True))
    alpha = jnp.exp(m_scr[...] - m_new)
    p = jnp.exp(s - m_new)
    l_scr[...] = alpha * l_scr[...] + jnp.sum(p, axis=-1, keepdims=True)
    acc_scr[...] = alpha * acc_scr[...] + jnp.dot(
        p.astype(v_ref.dtype), v_ref[0, 0], preferred_element_type=jnp.float32)
    m_scr[...] = m_new

    # Last key tile of this head: normalize and fold this head's slice of the output
    # projection directly into the (tq, D) accumulator (no head-concat materialized).
    @pl.when(kv == n_kv - 1)
    def _():
        o_h = acc_scr[...] * pl.reciprocal(l_scr[...], approx=approx_recip)  # (tq, d)
        out_scr[...] += jnp.dot(o_h.astype(wout_ref.dtype), wout_ref[0],
                                preferred_element_type=jnp.float32)

    @pl.when(jnp.logical_and(h == heads - 1, kv == n_kv - 1))
    def _():
        o_ref[0] = (out_scr[...] + bout_ref[...]).astype(o_ref.dtype)


def _matmul_bias_kernel(x_ref, w_ref, b_ref, o_ref, acc_ref, *, activation):
    """out[b, qi, j] = act(sum_k x[b, qi, k-tile] @ w[k-tile, j] + b[j]); K is last grid axis."""
    k = pl.program_id(3)

    @pl.when(k == 0)
    def _():
        acc_ref[...] = jnp.zeros_like(acc_ref)

    acc_ref[...] += jnp.dot(x_ref[0], w_ref[...], preferred_element_type=jnp.float32)

    @pl.when(k == pl.num_programs(3) - 1)
    def _():
        y = acc_ref[...] + b_ref[...]
        if activation == "gelu":
            y = jax.nn.gelu(y, approximate=False)   # matches nn.GELU default (erf)
        o_ref[0] = y.astype(o_ref.dtype)


def _mlp_out_kernel(h_ref, w2_ref, b2_ref, attn_ref, x_ref, o_ref, acc_ref):
    """out = LayerNorm2(hidden @ W2 + b2 + attn_out) + x  (fused epilogue at K == last)."""
    k = pl.program_id(2)

    @pl.when(k == 0)
    def _():
        acc_ref[...] = jnp.zeros_like(acc_ref)

    acc_ref[...] += jnp.dot(h_ref[0], w2_ref[...], preferred_element_type=jnp.float32)

    @pl.when(k == pl.num_programs(2) - 1)
    def _():
        y = acc_ref[...] + b2_ref[...] + attn_ref[0].astype(jnp.float32)
        y = _ln(y)                                                   # layer_norm2 over D
        o_ref[0] = (y + x_ref[0].astype(jnp.float32)).astype(o_ref.dtype)   # Residual


# ---------------------------------------------------------------------------
# layer wrapper
# ---------------------------------------------------------------------------
def _prepare_layer_params(p, heads, compute_dtype):
    """Reshape weights once into kernel-friendly layouts and cast matmul inputs."""
    D = p["wout"].shape[0]
    d = D // heads
    # wqkv columns are ordered (qkv, head, d) -> (3H, D, d): one grid step produces one
    # head's q/k/v tile with a lane-aligned (full) last dim.
    wqkv = p["wqkv"].reshape(D, 3, heads, d).transpose(1, 2, 0, 3).reshape(3 * heads, D, d)
    # wout rows are ordered (head, d) -> (H, d, D) for the per-head folded projection.
    wout = p["wout"].reshape(heads, d, D)
    return {
        "wqkv": wqkv.astype(compute_dtype),
        "wout": wout.astype(compute_dtype),
        "bout": p["bout"].astype(jnp.float32),
        "w1": p["w1"].astype(compute_dtype),
        "b1": p["b1"].astype(jnp.float32),
        "w2": p["w2"].astype(compute_dtype),
        "b2": p["b2"].astype(jnp.float32),
    }


def parallel_attention_feed_layer(x, kp, heads, compute_dtype, cfg):
    """One Residual(ParallelAttentionFeed) layer as four tiled pallas_calls."""
    B, N, D = x.shape
    d = D // heads
    M = kp["w1"].shape[1]
    scale = float(D) ** (-0.5)               # matches the reference: dim**-0.5 (not head_dim)
    itemsize = jnp.dtype(compute_dtype).itemsize
    f32 = jnp.float32

    # Tile sizes (degenerate to full dims at toy sizes; multiples of (8, 128) otherwise).
    tq = _pick_tile(N, cfg["tq"], 8)          # sequence tile (sublane axis)
    tkv = tq                                  # key/value sequence tile
    tkd = _pick_tile(D, cfg["tk"], 128)       # K tile over model dim
    tkm = _pick_tile(M, cfg["tk"], 128)       # K tile over mlp dim
    tnm = _pick_tile(M, cfg["tn"], 128)       # output tile over mlp dim

    n_q, n_kv = N // tq, N // tkv
    n_kd, n_km, n_m = D // tkd, M // tkm, M // tnm

    def cparams(sem):
        return pltpu.CompilerParams(dimension_semantics=sem,
                                    vmem_limit_bytes=cfg["vmem"])

    # ---- 1) QKV projection: (B, N, D) @ (D, 3D) -> (B, 3H, N, d) ----------------------
    qkv = pl.pallas_call(
        _qkv_proj_kernel,
        out_shape=jax.ShapeDtypeStruct((B, 3 * heads, N, d), compute_dtype),
        grid=(B, n_q, 3 * heads, n_kd),
        in_specs=[
            pl.BlockSpec((1, tq, tkd), lambda b, qi, c, k: (b, qi, k)),      # x
            pl.BlockSpec((1, tkd, d), lambda b, qi, c, k: (c, k, 0)),        # wqkv (3H, D, d)
        ],
        out_specs=pl.BlockSpec((1, 1, tq, d), lambda b, qi, c, k: (b, c, qi, 0)),
        scratch_shapes=[pltpu.VMEM((tq, d), f32)],
        compiler_params=cparams(("parallel", "parallel", "parallel", "arbitrary")),
        cost_estimate=pl.CostEstimate(
            flops=2 * B * N * D * 3 * D, transcendentals=0,
            bytes_accessed=(B * N * D + 3 * D * D + 3 * B * N * D) * itemsize),
    )(x, kp["wqkv"])

    # ---- 2) attention (online softmax over key tiles) + folded output projection ------
    attn_kernel = functools.partial(
        _attention_kernel, scale=scale, heads=heads,
        approx_recip=(compute_dtype != jnp.float32))
    attn_out = pl.pallas_call(
        attn_kernel,
        out_shape=jax.ShapeDtypeStruct((B, N, D), compute_dtype),
        grid=(B, n_q, heads, n_kv),
        in_specs=[
            pl.BlockSpec((1, 1, tq, d), lambda b, qi, h, kv: (b, h, qi, 0)),               # q
            pl.BlockSpec((1, 1, tkv, d), lambda b, qi, h, kv: (b, heads + h, kv, 0)),      # k
            pl.BlockSpec((1, 1, tkv, d), lambda b, qi, h, kv: (b, 2 * heads + h, kv, 0)),  # v
            pl.BlockSpec((1, d, D), lambda b, qi, h, kv: (h, 0, 0)),                       # wout
            pl.BlockSpec((1, D), lambda b, qi, h, kv: (0, 0)),                             # bout
        ],
        out_specs=pl.BlockSpec((1, tq, D), lambda b, qi, h, kv: (b, qi, 0)),
        scratch_shapes=[
            pltpu.VMEM((tq, d), compute_dtype),   # cached LayerNorm(q)
            pltpu.VMEM((tq, 1), f32),             # running max
            pltpu.VMEM((tq, 1), f32),             # running softmax denominator
            pltpu.VMEM((tq, d), f32),             # per-head attention accumulator
            pltpu.VMEM((tq, D), f32),             # projected (tq, D) output accumulator
        ],
        compiler_params=cparams(("parallel", "parallel", "arbitrary", "arbitrary")),
        cost_estimate=pl.CostEstimate(
            flops=4 * B * heads * N * N * d + 2 * B * N * D * D,
            transcendentals=B * heads * N * N,
            bytes_accessed=(3 * B * N * D + heads * d * D + B * N * D) * itemsize),
    )(qkv, qkv, qkv, kp["wout"], kp["bout"])

    # ---- 3) parallel MLP hidden: gelu(x @ W1 + b1) -------------------------------------
    hid = pl.pallas_call(
        functools.partial(_matmul_bias_kernel, activation="gelu"),
        out_shape=jax.ShapeDtypeStruct((B, N, M), compute_dtype),
        grid=(B, n_q, n_m, n_kd),
        in_specs=[
            pl.BlockSpec((1, tq, tkd), lambda b, qi, j, k: (b, qi, k)),   # x
            pl.BlockSpec((tkd, tnm), lambda b, qi, j, k: (k, j)),         # w1
            pl.BlockSpec((1, tnm), lambda b, qi, j, k: (0, j)),           # b1
        ],
        out_specs=pl.BlockSpec((1, tq, tnm), lambda b, qi, j, k: (b, qi, j)),
        scratch_shapes=[pltpu.VMEM((tq, tnm), f32)],
        compiler_params=cparams(("parallel", "parallel", "parallel", "arbitrary")),
        cost_estimate=pl.CostEstimate(
            flops=2 * B * N * D * M, transcendentals=B * N * M,
            bytes_accessed=(B * N * D + D * M + B * N * M) * itemsize),
    )(x, kp["w1"], kp["b1"])

    # ---- 4) MLP out + bias + attn_out + LayerNorm2 + residual --------------------------
    out = pl.pallas_call(
        _mlp_out_kernel,
        out_shape=jax.ShapeDtypeStruct((B, N, D), compute_dtype),
        grid=(B, n_q, n_km),
        in_specs=[
            pl.BlockSpec((1, tq, tkm), lambda b, qi, k: (b, qi, k)),   # mlp hidden
            pl.BlockSpec((tkm, D), lambda b, qi, k: (k, 0)),           # w2 (full-D cols for LN)
            pl.BlockSpec((1, D), lambda b, qi, k: (0, 0)),             # b2
            pl.BlockSpec((1, tq, D), lambda b, qi, k: (b, qi, 0)),     # attn_out
            pl.BlockSpec((1, tq, D), lambda b, qi, k: (b, qi, 0)),     # x (residual)
        ],
        out_specs=pl.BlockSpec((1, tq, D), lambda b, qi, k: (b, qi, 0)),
        scratch_shapes=[pltpu.VMEM((tq, D), f32)],
        compiler_params=cparams(("parallel", "parallel", "arbitrary")),
        cost_estimate=pl.CostEstimate(
            flops=2 * B * N * M * D, transcendentals=0,
            bytes_accessed=(B * N * M + M * D + 3 * B * N * D) * itemsize),
    )(hid, kp["w2"], kp["b2"], attn_out, x)

    return out


def transformer22b(x, layer_params, heads, compute_dtype=jnp.bfloat16, cfg=None):
    """Transformer22B forward: depth x Residual(ParallelAttentionFeed)."""
    # TODO(synk): the optional attention `mask` argument (never passed by
    # Transformer22B.forward) is not implemented.
    if cfg is None:
        cfg = _tpu_config()
    x = x.astype(compute_dtype)
    for p in layer_params:
        kp = _prepare_layer_params(p, heads, compute_dtype)
        x = parallel_attention_feed_layer(x, kp, heads, compute_dtype, cfg)
    return x


# ---------------- pure-JAX reference (for verification) ----------------
def _ref_layer(x, p, heads):
    B, N, D = x.shape
    d = D // heads
    scale = float(D) ** (-0.5)
    qkv = x @ p["wqkv"]                                   # (B, N, 3D)
    qkv = qkv.reshape(B, N, 3, heads, d)
    q = jnp.transpose(qkv[:, :, 0], (0, 2, 1, 3))         # (B, H, N, d)
    k = jnp.transpose(qkv[:, :, 1], (0, 2, 1, 3))
    v = jnp.transpose(qkv[:, :, 2], (0, 2, 1, 3))
    q, k = _ln(q), _ln(k)
    dots = jnp.einsum("bhid,bhjd->bhij", q, k) * scale
    attn = jax.nn.softmax(dots, axis=-1)
    av = jnp.einsum("bhij,bhjd->bhid", attn, v)
    av = jnp.transpose(av, (0, 2, 1, 3)).reshape(B, N, D)
    attn_out = av @ p["wout"] + p["bout"][0]
    h = jax.nn.gelu(x @ p["w1"] + p["b1"][0], approximate=False)
    par = h @ p["w2"] + p["b2"][0]
    out = _ln(attn_out + par)
    return out + x


def _ref_model(x, layer_params, heads):
    for p in layer_params:
        x = _ref_layer(x, p, heads)
    return x


# ---------------- deterministic parameter init ----------------
def init_layer_params(key, dim, mlp_dim):
    ks = jax.random.split(key, 7)
    s = 0.05
    return {
        "wqkv": jax.random.normal(ks[0], (dim, 3 * dim), jnp.float32) * s,
        "wout": jax.random.normal(ks[1], (dim, dim), jnp.float32) * s,
        "bout": jax.random.normal(ks[2], (1, dim), jnp.float32) * s,
        "w1": jax.random.normal(ks[3], (dim, mlp_dim), jnp.float32) * s,
        "b1": jax.random.normal(ks[4], (1, mlp_dim), jnp.float32) * s,
        "w2": jax.random.normal(ks[5], (mlp_dim, dim), jnp.float32) * s,
        "b2": jax.random.normal(ks[6], (1, dim), jnp.float32) * s,
    }


if __name__ == "__main__":
    # Small shapes consistent with the module (toy Transformer22B config).
    B, N, DIM, HEADS, MLP_DIM, DEPTH = 2, 16, 32, 4, 64, 2

    key = jax.random.PRNGKey(0)
    key, xk = jax.random.split(key)
    x = jax.random.normal(xk, (B, N, DIM), jnp.float32)

    layer_keys = jax.random.split(key, DEPTH)
    layer_params = [init_layer_params(k, DIM, MLP_DIM) for k in layer_keys]

    ref = _ref_model(x, layer_params, HEADS)

    # (a) exact f32 path with tiny sequence tiles -> exercises the multi-step online-softmax
    #     and the accumulator init/writeback; must match the pure-JAX reference tightly.
    small_cfg = dict(tq=8, tn=128, tk=128, vmem=32 * 1024 * 1024)
    out_f32 = jax.block_until_ready(
        transformer22b(x, layer_params, HEADS, compute_dtype=jnp.float32, cfg=small_cfg))
    assert out_f32.shape == (B, N, DIM)
    err_f32 = float(jnp.max(jnp.abs(out_f32.astype(jnp.float32) - ref)))
    assert jnp.allclose(out_f32.astype(jnp.float32), ref, atol=2e-4, rtol=2e-4), (
        f"f32 path max abs diff {err_f32}")

    # (b) production path: bf16 MXU inputs, f32 accumulation, per-generation tile table.
    out_bf16 = jax.block_until_ready(
        transformer22b(x, layer_params, HEADS, compute_dtype=jnp.bfloat16))
    err_bf16 = float(jnp.max(jnp.abs(out_bf16.astype(jnp.float32) - ref)))
    assert err_bf16 < 0.25, f"bf16 path max abs diff {err_bf16}"

    print("KERNEL_OK")
</pallas_src>

<mosaic_0001>
module attributes {stable_mosaic.version = 11 : i64} {
  func.func @_qkv_proj_kernel(%arg0: i32, %arg1: i32, %arg2: i32, %arg3: i32, %arg4: memref<1x8x32xf32, #tpu.memory_space<vmem>>, %arg5: memref<1x32x8xf32, #tpu.memory_space<vmem>>, %arg6: memref<1x1x8x8xf32, #tpu.memory_space<vmem>>, %arg7: memref<8x8xf32, #tpu.memory_space<vmem>>) attributes {dimension_semantics = [#tpu.dimension_semantics<parallel>, #tpu.dimension_semantics<parallel>, #tpu.dimension_semantics<parallel>, #tpu.dimension_semantics<arbitrary>], iteration_bounds = array<i64: 2, 2, 12, 1>, scalar_prefetch = 0 : i64, scratch_operands = 1 : i64, tpu.core_type = #tpu.core_type<tc>, window_params = [{transform_indices = @transform_0, window_bounds = array<i64: 1, 8, 32>}, {transform_indices = @transform_1, window_bounds = array<i64: 1, 32, 8>}, {transform_indices = @transform_2, window_bounds = array<i64: 1, 1, 8, 8>}]} {
    %c0_i32 = arith.constant 0 : i32
    %0 = arith.cmpi eq, %arg3, %c0_i32 : i32
    %1 = arith.extui %0 : i1 to i32
    %c0_i32_0 = arith.constant 0 : i32
    %2 = arith.cmpi ne, %1, %c0_i32_0 : i32
    scf.if %2 {
      %cst_12 = arith.constant 0.000000e+00 : f32
      %14 = vector.broadcast %cst_12 : f32 to vector<8x8xf32>
      %c0_13 = arith.constant 0 : index
      %c0_14 = arith.constant 0 : index
      %15 = vector.load %arg7[%c0_13, %c0_14] : memref<8x8xf32, #tpu.memory_space<vmem>>, vector<8x8xf32>
      tpu.vector_store %arg7[%c0_13, %c0_14], %14 {strides = array<i32>} : memref<8x8xf32, #tpu.memory_space<vmem>>, vector<8x8xf32>,
    } else {
    }
    %c0 = arith.constant 0 : index
    %c0_1 = arith.constant 0 : index
    %3 = vector.load %arg7[%c0, %c0_1] : memref<8x8xf32, #tpu.memory_space<vmem>>, vector<8x8xf32>
    %c0_2 = arith.constant 0 : index
    %c0_3 = arith.constant 0 : index
    %c0_4 = arith.constant 0 : index
    %4 = vector.load %arg4[%c0_2, %c0_3, %c0_4] : memref<1x8x32xf32, #tpu.memory_space<vmem>>, vector<1x8x32xf32>
    %5 = vector.shape_cast %4 : vector<1x8x32xf32> to vector<8x32xf32>
    %c0_5 = arith.constant 0 : index
    %c0_6 = arith.constant 0 : index
    %c0_7 = arith.constant 0 : index
    %6 = vector.load %arg5[%c0_5, %c0_6, %c0_7] : memref<1x32x8xf32, #tpu.memory_space<vmem>>, vector<1x32x8xf32>
    %7 = vector.shape_cast %6 : vector<1x32x8xf32> to vector<32x8xf32>
    %cst = arith.constant dense<0.000000e+00> : vector<8x8xf32>
    %8 = tpu.matmul %5, %7, %cst {dimension_numbers = #tpu.dot_dimension_numbers<[1], [0], [0], [1], [0, 0, 1, 1], [], []>} : vector<8x32xf32>, vector<32x8xf32>, vector<8x8xf32> -> vector<8x8xf32>
    %9 = arith.addf %3, %8 : vector<8x8xf32>
    %c0_8 = arith.constant 0 : index
    %c0_9 = arith.constant 0 : index
    %10 = vector.load %arg7[%c0_8, %c0_9] : memref<8x8xf32, #tpu.memory_space<vmem>>, vector<8x8xf32>
    tpu.vector_store %arg7[%c0_8, %c0_9], %9 {strides = array<i32>} : memref<8x8xf32, #tpu.memory_space<vmem>>, vector<8x8xf32>,
    %c0_i32_10 = arith.constant 0 : i32
    %11 = arith.cmpi eq, %arg3, %c0_i32_10 : i32
    %12 = arith.extui %11 : i1 to i32
    %c0_i32_11 = arith.constant 0 : i32
    %13 = arith.cmpi ne, %12, %c0_i32_11 : i32
    scf.if %13 {
      %c0_12 = arith.constant 0 : index
      %c0_13 = arith.constant 0 : index
      %14 = vector.load %arg7[%c0_12, %c0_13] : memref<8x8xf32, #tpu.memory_space<vmem>>, vector<8x8xf32>
      %c0_14 = arith.constant 0 : index
      %c0_15 = arith.constant 0 : index
      %c0_16 = arith.constant 0 : index
      %c0_17 = arith.constant 0 : index
      %15 = vector.load %arg6[%c0_14, %c0_15, %c0_16, %c0_17] : memref<1x1x8x8xf32, #tpu.memory_space<vmem>>, vector<1x1x8x8xf32>
      %16 = vector.shape_cast %15 : vector<1x1x8x8xf32> to vector<8x8xf32>
      %17 = vector.shape_cast %14 : vector<8x8xf32> to vector<1x1x8x8xf32>
      tpu.vector_store %arg6[%c0_14, %c0_15, %c0_16, %c0_17], %17 {strides = array<i32>} : memref<1x1x8x8xf32, #tpu.memory_space<vmem>>, vector<1x1x8x8xf32>,
    } else {
    }
    return
  }
  func.func @transform_0(%arg0: i32, %arg1: i32, %arg2: i32, %arg3: i32) -> (i32, i32, i32) {
    %c0_i32 = arith.constant 0 : i32
    return %arg0, %arg1, %arg3 : i32, i32, i32
  }
  func.func @transform_1(%arg0: i32, %arg1: i32, %arg2: i32, %arg3: i32) -> (i32, i32, i32) {
    %c0_i32 = arith.constant 0 : i32
    %c0_i32_0 = arith.constant 0 : i32
    return %arg2, %arg3, %c0_i32 : i32, i32, i32
  }
  func.func @transform_2(%arg0: i32, %arg1: i32, %arg2: i32, %arg3: i32) -> (i32, i32, i32, i32) {
    %c0_i32 = arith.constant 0 : i32
    %c0_i32_0 = arith.constant 0 : i32
    return %arg0, %arg2, %arg1, %c0_i32 : i32, i32, i32, i32
  }
}

</mosaic_0001>

<llo_original>
// kernel: tpu_custom_call.1
$region0: #{tpu_custom_call.1}
  #allocation0 [shape = 'u32[]', space=smem, size = 0x4, offset = 0x4, fixed_abs, tag = 'smem constant byte address 0x4 - core index']
  #allocation1 [shape = 'u32[144,128]{1,0:T(1,128)}', space=vmem, size = 0x12000, scoped, tag = 'internal scratch']
  #allocation2 [shape = 'f32[8,8]{1,0:T(8,128)}', space=vmem, size = 0x1000, scoped, tag = 'scratch operand']
  %s0 = inlined_call_operand.vmem [shape: f32[2,16,32], index: 0, kind: input, shape index: {}]
  %s1 = inlined_call_operand.vmem [shape: f32[12,32,8], index: 1, kind: input, shape index: {}]
  %s2 = inlined_call_operand.vmem [shape: f32[2,12,16,8], index: 2, kind: output, shape index: {}]
  %s3 = sld [smem:[#allocation0]]
  $region49: #{tpu_custom_call.1} parent=0
    _
  %s5 = ssub.s32 1, %s3
  %s6 = scalar_select 0, %s5, %s3
  loop: start=0, step=1, limit=50
  $region2: #{tpu_custom_call.1} parent=0 // loop_pre_header
    _
  $region3: #{tpu_custom_call.1} parent=0 // loop_header
    %s8 = sphi 0, %s12
    %p9 = scmp.ge.s32.totalorder %s8, 50
    %s15 = sphi 0, %s41
    %s16 = sphi 0, %s37
    %s17 = sphi 0, %s33
    %s18 = sphi 0, %s29
    %s19 = sphi 0, %s15
    %s20 = sphi 0, %s16
    %s21 = sphi 0, %s17
    %s22 = sphi 0, %s18
    %s23 = sphi 0, %s19
    %s24 = sphi 0, %s20
    %s25 = sphi 0, %s21
    %s26 = sphi 0, %s22
    %s48 = sphi 0, %s50
    %s51 = sphi 0, %s48
    %s52 = sphi 0, %s51
    %s68 = sphi 0, %s52
    %s76 = sphi 0, %s78
    %s79 = sphi 0, %s76
    %s80 = sphi 0, %s79
    %s96 = sphi 0, %s80
    %s106 = sphi 0, %s108
    %s109 = sphi 0, %s106
    %s110 = sphi 0, %s109
    %s126 = sphi 0, %s110
  $region4: #{tpu_custom_call.1} parent=0 // loop_header_branch
    %11 = sbr.rel (%p9) target = $region8
  $region5: #{tpu_custom_call.1} parent=0 // loop_body
    %s13 = ssub.s32 %s8, 1
    %s14 = ssub.s32 %s8, 2
    %s27 = sadd.s32 1, %s18
    %p28 = scmp.ge.s32.totalorder %s27, 1
    %s29 = scalar_select %p28, 0, %s27
    %s30 = sadd.s32 1, %s17
    %s31 = scalar_select %p28, %s30, %s17
    %p32 = scmp.ge.s32.totalorder %s31, 12
    %s33 = scalar_select %p32, 0, %s31
    %s34 = sadd.s32 1, %s16
    %s35 = scalar_select %p32, %s34, %s16
    %p36 = scmp.ge.s32.totalorder %s35, 2
    %s37 = scalar_select %p36, 0, %s35
    %s38 = sadd.s32 1, %s15
    %s39 = scalar_select %p36, %s38, %s15
    %p40 = scmp.ge.s32.totalorder %s39, 2
    %s41 = scalar_select %p40, 0, %s39
    %s42 = ssub.s32 %s15, %s41
    %s43 = ssub.s32 %s16, %s37
    %s44 = sor.u32 %s42, %s43
    %s45 = ssub.s32 %s18, %s29
    %s46 = sor.u32 %s44, %s45
    %p47 = scmp.eq.s32.totalorder %s46, 0
    %s49 = sadd.s32 %s48, 1
    %s50 = scalar_select %p47, %s48, %s49
    %p53 = pneg %p47
    %p54 = scmp.eq.s32.totalorder %s8, 47
    %p55 = por %p53, %p54
    %p56 = scmp.ne.s32.totalorder %s48, %s51
    %p57 = scmp.eq.s32.totalorder %s8, 0
    %p58 = por %p56, %p57
    %p59 = scmp.ne.s32.totalorder %s48, %s51
    %p60 = scmp.eq.s32.totalorder %s13, 47
    %p61 = por %p59, %p60
    %p62 = scmp.ne.s32.totalorder %s51, %s52
    %p63 = scmp.eq.s32.totalorder %s13, 0
    %p64 = por %p62, %p63
    %p65 = scmp.ne.s32.totalorder %s51, %s52
    %p66 = scmp.eq.s32.totalorder %s14, 47
    %p67 = por %p65, %p66
    %p69 = scmp.ne.s32.totalorder %s52, %s68
    %p70 = scmp.eq.s32.totalorder %s14, 0
    %p71 = por %p69, %p70
    %s72 = ssub.s32 %s17, %s33
    %s73 = ssub.s32 %s18, %s29
    %s74 = sor.u32 %s72, %s73
    %p75 = scmp.eq.s32.totalorder %s74, 0
    %s77 = sadd.s32 %s76, 1
    %s78 = scalar_select %p75, %s76, %s77
    %p81 = pneg %p75
    %p82 = scmp.eq.s32.totalorder %s8, 47
    %p83 = por %p81, %p82
    %p84 = scmp.ne.s32.totalorder %s76, %s79
    %p85 = scmp.eq.s32.totalorder %s8, 0
    %p86 = por %p84, %p85
    %p87 = scmp.ne.s32.totalorder %s76, %s79
    %p88 = scmp.eq.s32.totalorder %s13, 47
    %p89 = por %p87, %p88
    %p90 = scmp.ne.s32.totalorder %s79, %s80
    %p91 = scmp.eq.s32.totalorder %s13, 0
    %p92 = por %p90, %p91
    %p93 = scmp.ne.s32.totalorder %s79, %s80
    %p94 = scmp.eq.s32.totalorder %s14, 47
    %p95 = por %p93, %p94
    %p97 = scmp.ne.s32.totalorder %s80, %s96
    %p98 = scmp.eq.s32.totalorder %s14, 0
    %p99 = por %p97, %p98
    %s100 = ssub.s32 %s15, %s41
    %s101 = ssub.s32 %s17, %s33
    %s102 = sor.u32 %s100, %s101
    %s103 = ssub.s32 %s16, %s37
    %s104 = sor.u32 %s102, %s103
    %p105 = scmp.eq.s32.totalorder %s104, 0
    %s107 = sadd.s32 %s106, 1
    %s108 = scalar_select %p105, %s106, %s107
    %p111 = pneg %p105
    %p112 = scmp.eq.s32.totalorder %s8, 47
    %p113 = por %p111, %p112
    %p114 = scmp.ne.s32.totalorder %s106, %s109
    %p115 = scmp.eq.s32.totalorder %s8, 0
    %p116 = por %p114, %p115
    %p117 = scmp.ne.s32.totalorder %s106, %s109
    %p118 = scmp.eq.s32.totalorder %s13, 47
    %p119 = por %p117, %p118
    %p120 = scmp.ne.s32.totalorder %s109, %s110
    %p121 = scmp.eq.s32.totalorder %s13, 0
    %p122 = por %p120, %p121
    %p123 = scmp.ne.s32.totalorder %s109, %s110
    %p124 = scmp.eq.s32.totalorder %s14, 47
    %p125 = por %p123, %p124
    %p127 = scmp.ne.s32.totalorder %s110, %s126
    %p128 = scmp.eq.s32.totalorder %s14, 0
    %p129 = por %p127, %p128
    %p130 = scmp.le.s32.totalorder 1, %s8
    %p131 = scmp.lt.s32.totalorder %s8, 49
    %p132 = pnand %p130, %p131
    %p133 = pneg %p132
    // Predicated region
    $region9: #{tpu_custom_call.1} parent=5 // pred_check
      _
    $region10: #{tpu_custom_call.1} parent=5 // pred_check_branch
      %135 = sbr.rel (%p132) target = $region12
    $region11: #{tpu_custom_call.1} parent=5 // pred_region
      %s136 = ssub.s32 %s8, 1
    $region12: #{tpu_custom_call.1} parent=5 // pred_fallthru
      _
    %p137 = scmp.lt.s32.totalorder %s8, 48
    // Predicated region
    $region13: #{tpu_custom_call.1} parent=5 // pred_check
      %p138 = pneg %p137
    $region14: #{tpu_custom_call.1} parent=5 // pred_check_branch
      %140 = sbr.rel (%p138) target = $region16
    $region15: #{tpu_custom_call.1} parent=5 // pred_region
      // Predicated region
      $region17: #{tpu_custom_call.1} parent=15 // pred_check
        %p141 = pneg %p58
      $region18: #{tpu_custom_call.1} parent=15 // pred_check_branch
        %143 = sbr.rel (%p141) target = $region20
      $region19: #{tpu_custom_call.1} parent=15 // pred_region
        %p144 = scmp.lt.s32.totalorder %s15, 1
        %s145 = scalar_select %p144, %s15, 1
        %p146 = scmp.lt.s32.totalorder %s16, 1
        %s147 = scalar_select %p146, %s16, 1
        %p148 = scmp.lt.s32.totalorder %s18, 0
        %s149 = scalar_select %p148, %s18, 0
        %s150 = sadd.s32 %s149, %s147
        %s151 = smul.addr %s145, 2
        %s152 = sadd.s32 %s150, %s151
        %s153 = smul.addr %s152, 8
        %s154 = scalar_lea.vmem %s0, %s153
      $region20: #{tpu_custom_call.1} parent=15 // pred_fallthru
        _
      // Predicated region
      $region21: #{tpu_custom_call.1} parent=15 // pred_check
        %p155 = pneg %p86
      $region22: #{tpu_custom_call.1} parent=15 // pred_check_branch
        %157 = sbr.rel (%p155) target = $region24
      $region23: #{tpu_custom_call.1} parent=15 // pred_region
        %s158 = smul.u32 4, %s18
        %p159 = scmp.lt.s32.totalorder %s17, 11
        %s160 = scalar_select %p159, %s17, 11
        %p161 = scmp.lt.s32.totalorder %s158, 3
        %s162 = scalar_select %p161, %s158, 3
        %s163 = smul.addr %s160, 4
        %s164 = sadd.s32 %s162, %s163
        %s165 = smul.addr %s164, 8
        %s166 = scalar_lea.vmem %s1, %s165
        %s167 = smul.u32 4, %s18
      $region24: #{tpu_custom_call.1} parent=15 // pred_fallthru
        _
    $region16: #{tpu_custom_call.1} parent=5 // pred_fallthru
      _
    %p168 = scmp.le.s32.totalorder 1, %s8
    %p169 = scmp.lt.s32.totalorder %s8, 49
    %p170 = pnand %p168, %p169
    %p171 = pneg %p170
    // Predicated region
    $region25: #{tpu_custom_call.1} parent=5 // pred_check
      _
    $region26: #{tpu_custom_call.1} parent=5 // pred_check_branch
      %173 = sbr.rel (%p170) target = $region28
    $region27: #{tpu_custom_call.1} parent=5 // pred_region
      %s174 = ssub.s32 %s8, 1
      %p175 = scmp.lt.s32.totalorder %s19, 1
      %s176 = scalar_select %p175, %s19, 1
      %p177 = scmp.lt.s32.totalorder %s20, 1
      %s178 = scalar_select %p177, %s20, 1
      %p179 = scmp.lt.s32.totalorder %s22, 0
      %s180 = scalar_select %p179, %s22, 0
      %s181 = sadd.s32 %s180, %s178
      %s182 = smul.addr %s176, 2
      %s183 = sadd.s32 %s181, %s182
      %s184 = smul.addr %s183, 8
      %s185 = scalar_lea.vmem %s0, %s184
      %p186 = pneg %p64
      %p187 = pneg %p61
      %s188 = smul.u32 4, %s22
      %p189 = scmp.lt.s32.totalorder %s21, 11
      %s190 = scalar_select %p189, %s21, 11
      %p191 = scmp.lt.s32.totalorder %s188, 3
      %s192 = scalar_select %p191, %s188, 3
      %s193 = smul.addr %s190, 4
      %s194 = sadd.s32 %s192, %s193
      %s195 = smul.addr %s194, 8
      %s196 = scalar_lea.vmem %s1, %s195
      %p197 = pneg %p92
      %p198 = pneg %p89
      %p199 = pneg %p122
      %p200 = pneg %p119
      %p201 = scmp.lt.s32.totalorder %s19, 1
      %s202 = scalar_select %p201, %s19, 1
      %p203 = scmp.lt.s32.totalorder %s21, 11
      %s204 = scalar_select %p203, %s21, 11
      %p205 = scmp.lt.s32.totalorder %s20, 1
      %s206 = scalar_select %p205, %s20, 1
      %s207 = smul.addr %s204, 2
      %s208 = sadd.s32 %s206, %s207
      %s209 = smul.addr %s202, 24
      %s210 = sadd.s32 %s208, %s209
      %s211 = smul.addr %s210, 8
      %s212 = scalar_lea.vmem %s2, %s211
      %p213 = scmp.lt.s32.totalorder %s19, 1
      %s214 = scalar_select %p213, %s19, 1
      %p215 = scmp.lt.s32.totalorder %s20, 1
      %s216 = scalar_select %p215, %s20, 1
      %p217 = scmp.lt.s32.totalorder %s22, 0
      %s218 = scalar_select %p217, %s22, 0
      %s219 = sadd.s32 %s218, %s216
      %s220 = smul.addr %s214, 2
      %s221 = sadd.s32 %s219, %s220
      %s222 = smul.addr %s221, 8
      %s223 = scalar_lea.vmem %s0, %s222
      %s224 = smul.u32 4, %s22
      %p225 = scmp.lt.s32.totalorder %s21, 11
      %s226 = scalar_select %p225, %s21, 11
      %p227 = scmp.lt.s32.totalorder %s224, 3
      %s228 = scalar_select %p227, %s224, 3
      %s229 = smul.addr %s226, 4
      %s230 = sadd.s32 %s228, %s229
      %s231 = smul.addr %s230, 8
      %s232 = scalar_lea.vmem %s1, %s231
      %s233 = smul.u32 4, %s22
      %p234 = scmp.lt.s32.totalorder %s19, 1
      %s235 = scalar_select %p234, %s19, 1
      %p236 = scmp.lt.s32.totalorder %s21, 11
      %s237 = scalar_select %p236, %s21, 11
      %p238 = scmp.lt.s32.totalorder %s20, 1
      %s239 = scalar_select %p238, %s20, 1
      %s240 = smul.addr %s237, 2
      %s241 = sadd.s32 %s239, %s240
      %s242 = smul.addr %s235, 24
      %s243 = sadd.s32 %s241, %s242
      %s244 = smul.addr %s243, 8
      %s245 = scalar_lea.vmem %s2, %s244
      %p246 = scmp.eq.s32.totalorder %s22, 0
      // Predicated region
      $region29: #{tpu_custom_call.1} parent=27 // pred_check
        %p247 = pneg %p246
      $region30: #{tpu_custom_call.1} parent=27 // pred_check_branch
        %249 = sbr.rel (%p247) target = $region32
      $region31: #{tpu_custom_call.1} parent=27 // pred_region
        %vm250 = vcmask 64512
        %251 = vst.msk [vmem:[#allocation2] sm:$0xff] %vm250, 0.0
      $region32: #{tpu_custom_call.1} parent=27 // pred_fallthru
        _
      %v252 = vld [vmem:[#allocation2] sm:$0xff]
      %v253 = vld [vmem:[%s223] sm:$0xff]
      %v254 = vld [vmem:[%s232] sm:$0xff]
      %v255 = vld [vmem:[%s232 + $0x8] sm:$0xff]
      %v256 = vld [vmem:[%s232 + $0x10] sm:$0xff]
      %v257 = vld [vmem:[%s232 + $0x18] sm:$0xff]
      %vm258 = vcmask 261120
      %v260 = vsel %vm258, %v253, 0
      %262 = vmatprep.subr.mxu0 0.0
      %263 = vmatpush1.msra.mxu0 %v254
      %264 = vmatprep.subr.mxu0 0.0
      %265 = vmatpush1.msra.mxu0 %v255
      %266 = vmatprep.subr.mxu0 0.0
      %267 = vmatpush1.msra.mxu0 %v256
      %268 = vmatprep.subr.mxu0 0.0
      %269 = vmatpush1.msra.mxu0 %v257
      %270 = vmatprep.subr.mxu0 0.0
      %271 = vmatpush1.msra.mxu0 0.0
      %272 = vmatprep.subr.mxu0 0.0
      %273 = vmatpush1.msra.mxu0 0.0
      %274 = vmatprep.subr.mxu0 0.0
      %275 = vmatpush1.msra.mxu0 0.0
      %276 = vmatprep.subr.mxu0 0.0
      %277 = vmatpush1.msra.mxu0 0.0
      %278 = vmatprep.subr.mxu0 0.0
      %279 = vmatpush1.msra.mxu0 0.0
      %280 = vmatprep.subr.mxu0 0.0
      %281 = vmatpush1.msra.mxu0 0.0
      %282 = vmatprep.subr.mxu0 0.0
      %283 = vmatpush1.msra.mxu0 0.0
      %284 = vmatprep.subr.mxu0 0.0
      %285 = vmatpush1.msra.mxu0 0.0
      %286 = vmatprep.subr.mxu0 0.0
      %287 = vmatpush1.msra.mxu0 0.0
      %288 = vmatprep.subr.mxu0 0.0
      %289 = vmatpush1.msra.mxu0 0.0
      %290 = vmatprep.subr.mxu0 0.0
      %291 = vmatpush1.msra.mxu0 0.0
      %292 = vmatprep.subr.mxu0 0.0
      %293 = vmatpush1.msra.mxu0 0.0
      %294 = vmatprep.subr.mxu0 0.0
      %295 = vmatpush1.msra.mxu0 0.0
      %296 = vmatprep.subr.mxu0 0.0
      %297 = vmatpush1.msra.mxu0 0.0
      %298 = vmatprep.subr.mxu0 0.0
      %299 = vmatpush1.msra.mxu0 0.0
      %300 = vmatprep.subr.mxu0 0.0
      %301 = vmatpush1.msra.mxu0 0.0
      %302 = vmatprep.subr.mxu0 0.0
      %303 = vmatpush1.msra.mxu0 0.0
      %304 = vmatprep.subr.mxu0 0.0
      %305 = vmatpush1.msra.mxu0 0.0
      %306 = vmatprep.subr.mxu0 0.0
      %307 = vmatpush1.msra.mxu0 0.0
      %308 = vmatprep.subr.mxu0 0.0
      %309 = vmatpush1.msra.mxu0 0.0
      %310 = vmatprep.subr.mxu0 0.0
      %311 = vmatpush1.msra.mxu0 0.0
      %312 = vmatprep.subr.mxu0 0.0
      %313 = vmatpush1.msra.mxu0 0.0
      %314 = vmatprep.subr.mxu0 0.0
      %315 = vmatpush1.msra.mxu0 0.0
      %316 = vmatprep.subr.mxu0 0.0
      %317 = vmatpush1.msra.mxu0 0.0
      %318 = vmatprep.subr.mxu0 0.0
      %319 = vmatpush1.msra.mxu0 0.0
      %320 = vmatprep.subr.mxu0 0.0
      %321 = vmatpush1.msra.mxu0 0.0
      %322 = vmatprep.subr.mxu0 0.0
      %323 = vmatpush1.msra.mxu0 0.0
      %324 = vmatprep.subr.mxu0 0.0
      %325 = vmatpush1.msra.mxu0 0.0
      %326 = vmatprep.mubr.f32.mxu0 0.0
      %327 = vmatmul.mubr.f32.gmra.mrb[0].mxu0 %v260
      %v328 = vpop.f32.mrb[0].mxu0
      %v329 = vadd.f32 0.0, %v328
      %v330 = vpop.f32.mrb[0].mxu0
      %331 = vdwg.mxu0
      %v332 = vadd.f32 %v252, %v329
      %vm333 = vcmask 64512
      %334 = vst.msk [vmem:[#allocation2] sm:$0xff] %vm333, %v332
      // Predicated region
      $region33: #{tpu_custom_call.1} parent=27 // pred_check
        %p335 = pneg %p246
      $region34: #{tpu_custom_call.1} parent=27 // pred_check_branch
        %337 = sbr.rel (%p335) target = $region36
      $region35: #{tpu_custom_call.1} parent=27 // pred_region
        %v338 = vld [vmem:[#allocation2] sm:$0xff]
        %339 = vst.msk [vmem:[%s245] sm:$0xff] %vm333, %v338
      $region36: #{tpu_custom_call.1} parent=27 // pred_fallthru
        _
      %p340 = scmp.lt.s32.totalorder %s19, 1
      %s341 = scalar_select %p340, %s19, 1
      %p342 = scmp.lt.s32.totalorder %s21, 11
      %s343 = scalar_select %p342, %s21, 11
      %p344 = scmp.lt.s32.totalorder %s20, 1
      %s345 = scalar_select %p344, %s20, 1
      %s346 = smul.addr %s343, 2
      %s347 = sadd.s32 %s345, %s346
      %s348 = smul.addr %s341, 24
      %s349 = sadd.s32 %s347, %s348
      %s350 = smul.addr %s349, 8
      %s351 = scalar_lea.vmem %s2, %s350
      // Predicated region
      $region37: #{tpu_custom_call.1} parent=27 // pred_check
        %p352 = pneg %p119
      $region38: #{tpu_custom_call.1} parent=27 // pred_check_branch
        %354 = sbr.rel (%p352) target = $region40
      $region39: #{tpu_custom_call.1} parent=27 // pred_region
        _
      $region40: #{tpu_custom_call.1} parent=27 // pred_fallthru
        _
    $region28: #{tpu_custom_call.1} parent=5 // pred_fallthru
      _
    %p355 = scmp.le.s32.totalorder 2, %s8
    // Predicated region
    $region41: #{tpu_custom_call.1} parent=5 // pred_check
      %p356 = pneg %p355
    $region42: #{tpu_custom_call.1} parent=5 // pred_check_branch
      %358 = sbr.rel (%p356) target = $region44
    $region43: #{tpu_custom_call.1} parent=5 // pred_region
      %s359 = ssub.s32 %s8, 2
      // Predicated region
      $region45: #{tpu_custom_call.1} parent=43 // pred_check
        %p360 = pneg %p125
      $region46: #{tpu_custom_call.1} parent=43 // pred_check_branch
        %362 = sbr.rel (%p360) target = $region48
      $region47: #{tpu_custom_call.1} parent=43 // pred_region
        %p363 = scmp.lt.s32.totalorder %s23, 1
        %s364 = scalar_select %p363, %s23, 1
        %p365 = scmp.lt.s32.totalorder %s25, 11
        %s366 = scalar_select %p365, %s25, 11
        %p367 = scmp.lt.s32.totalorder %s24, 1
        %s368 = scalar_select %p367, %s24, 1
        %s369 = smul.addr %s366, 2
        %s370 = sadd.s32 %s368, %s369
        %s371 = smul.addr %s364, 24
        %s372 = sadd.s32 %s370, %s371
        %s373 = smul.addr %s372, 8
        %s374 = scalar_lea.vmem %s2, %s373
      $region48: #{tpu_custom_call.1} parent=43 // pred_fallthru
        _
    $region44: #{tpu_custom_call.1} parent=5 // pred_fallthru
      _
  $region6: #{tpu_custom_call.1} parent=0 // loop_footer
    %s12 = sadd.s32 1, %s8
  $region7: #{tpu_custom_call.1} parent=0 // loop_footer_branch
    %7 = sbr.rel target = $region3
  $region8: #{tpu_custom_call.1} parent=0 // loop_exit
    _

</llo_original>
